<compile_context>
chip_gen: v7x
topology: tpu7x:2x2x1
jax: 0.10.0
libtpu: 0.0.40
codegen_flags: <defaults>
</compile_context>

<pallas_src>
import functools

import jax
import jax.numpy as jnp
from jax import lax
from jax.experimental import pallas as pl
from jax.experimental.pallas import tpu as pltpu  # noqa: F401  (TPU backend)

EPS = 1e-5


# ============================================================================
# Pallas kernels
# ============================================================================
def _conv3_bn_relu_kernel(*refs, H, W, n_in, has_res, eps):
    """Fused: 3x3 conv (im2col, channel-concat of n_in inputs) + bias
    [+ dense residual] + BatchNorm2d (batch stats) + ReLU.

    refs = n_in padded inputs (N,H+2,W+2,Ci), w (9*sum(Ci),Cout),
           b/gamma/beta (1,Cout), [res (N*H*W,Cout)], out (N*H*W,Cout).
    """
    in_refs = refs[:n_in]
    w_ref, b_ref, g_ref, be_ref = refs[n_in:n_in + 4]
    res_ref = refs[n_in + 4] if has_res else None
    o_ref = refs[-1]

    N = in_refs[0].shape[0]
    cols = []
    for kh in range(3):
        for kw in range(3):
            for r in in_refs:                     # fused concat: up then skip
                C = r.shape[-1]
                cols.append(r[:, kh:kh + H, kw:kw + W, :].reshape(N * H * W, C))
    patch = jnp.concatenate(cols, axis=-1)        # (N*H*W, 9*Cin_total)
    # one wide MXU matmul instead of 9 narrow per-tap matmuls
    acc = jnp.dot(patch, w_ref[...], preferred_element_type=jnp.float32)
    acc = acc + b_ref[...]
    if has_res:
        acc = acc + res_ref[...]

    # BatchNorm (training mode) over all N*H*W rows, biased variance.
    # Centered variance for f32 robustness at tiny row counts.
    n_rows = acc.shape[0]
    mean = jnp.sum(acc, axis=0, keepdims=True) * (1.0 / n_rows)
    d = acc - mean
    var = jnp.sum(d * d, axis=0, keepdims=True) * (1.0 / n_rows)
    out = d * (lax.rsqrt(var + eps) * g_ref[...]) + be_ref[...]
    o_ref[...] = jnp.maximum(out, 0.0)


def _deconv_subpixel_kernel(xp_ref, w_ref, b_ref, o_ref, *, H, W):
    """ConvTranspose2d(k=4, s=2, p=1) as 4 sub-pixel 2x2-tap matmuls.

    xp: (N, H+2, W+2, Cin)  -- input padded by 1 (NOT zero-dilated).
    w : (4, 4*Cin, Cout)    -- one weight slab per output parity (a, b).
    o : (4, N*H*W, Cout)    -- parity planes, interleaved by the wrapper.
    """
    N = xp_ref.shape[0]
    C = xp_ref.shape[-1]
    for a in range(2):
        for b in range(2):
            cols = [
                xp_ref[:, a + t:a + t + H, b + u:b + u + W, :].reshape(N * H * W, C)
                for t in range(2) for u in range(2)
            ]
            patch = jnp.concatenate(cols, axis=-1)        # (N*H*W, 4*Cin)
            plane = jnp.dot(patch, w_ref[a * 2 + b],
                            preferred_element_type=jnp.float32) + b_ref[...]
            o_ref[a * 2 + b] = plane


def _conv1x1_kernel(x_ref, w_ref, b_ref, o_ref):
    """1x1 conv: (rows, Cin) @ (Cin, Cout) + bias."""
    x = x_ref[...]
    w = w_ref[...]
    cin = x.shape[-1]
    if cin < 8:
        # degenerate contraction: VPU broadcast-MACs instead of a K=1/2 matmul
        acc = jnp.zeros(o_ref.shape, jnp.float32)
        for ci in range(cin):
            acc = acc + x[:, ci:ci + 1] * w[ci:ci + 1, :]
        o_ref[...] = acc + b_ref[...]
    else:
        o_ref[...] = jnp.dot(x, w, preferred_element_type=jnp.float32) + b_ref[...]


def _channel_att_kernel(x_ref, w1_ref, w2_ref, o_ref):
    """ChannelAttention: global max pool + fc1 + ReLU + fc2 + sigmoid."""
    m = jnp.max(x_ref[...], axis=1)                        # (N, C)
    h = jnp.maximum(jnp.dot(m, w1_ref[...], preferred_element_type=jnp.float32), 0.0)
    s = jnp.dot(h, w2_ref[...], preferred_element_type=jnp.float32)
    o_ref[...] = 1.0 / (1.0 + jnp.exp(-s))


def _spatial_att_kernel(cmp_ref, w_ref, o_ref, *, H, W):
    """SpatialAttention 7x7 conv (1->1 channel) + sigmoid on the padded
    channel-max map.  cmp: (N, H+6, W+6, 1); w: (1, 49); out: (N*H*W, 1)."""
    N = cmp_ref.shape[0]
    cols = [
        cmp_ref[:, kh:kh + H, kw:kw + W, :].reshape(N * H * W, 1)
        for kh in range(7) for kw in range(7)
    ]
    patch = jnp.concatenate(cols, axis=-1)                 # (N*H*W, 49)
    s = jnp.sum(patch * w_ref[...], axis=1, keepdims=True)
    o_ref[...] = 1.0 / (1.0 + jnp.exp(-s))


# ============================================================================
# Cached pallas_call builders (one compile per shape/config)
# ============================================================================
@functools.lru_cache(maxsize=None)
def _conv3_call(N, H, W, cins, cout, has_res):
    kernel = functools.partial(_conv3_bn_relu_kernel, H=H, W=W,
                               n_in=len(cins), has_res=has_res, eps=EPS)
    return jax.jit(pl.pallas_call(
        kernel, out_shape=jax.ShapeDtypeStruct((N * H * W, cout), jnp.float32)))


@functools.lru_cache(maxsize=None)
def _deconv_call(N, H, W, cin, cout):
    kernel = functools.partial(_deconv_subpixel_kernel, H=H, W=W)
    return jax.jit(pl.pallas_call(
        kernel, out_shape=jax.ShapeDtypeStruct((4, N * H * W, cout), jnp.float32)))


@functools.lru_cache(maxsize=None)
def _conv1x1_call(rows, cin, cout):
    return jax.jit(pl.pallas_call(
        _conv1x1_kernel, out_shape=jax.ShapeDtypeStruct((rows, cout), jnp.float32)))


@functools.lru_cache(maxsize=None)
def _channel_att_call(N, HW, C, Cr):
    return jax.jit(pl.pallas_call(
        _channel_att_kernel, out_shape=jax.ShapeDtypeStruct((N, C), jnp.float32)))


@functools.lru_cache(maxsize=None)
def _spatial_att_call(N, H, W):
    kernel = functools.partial(_spatial_att_kernel, H=H, W=W)
    return jax.jit(pl.pallas_call(
        kernel, out_shape=jax.ShapeDtypeStruct((N * H * W, 1), jnp.float32)))


# ============================================================================
# Pallas-backed ops (NHWC)
# ============================================================================
def _subpixel_weights(wd):
    """(Cin, Cout, 4, 4) ConvTranspose2d weight -> (4, 4*Cin, Cout) parity slabs."""
    ws = []
    for a in range(2):
        for b in range(2):
            taps = [wd[:, :, (3 - a) - 2 * t, (3 - b) - 2 * u]
                    for t in range(2) for u in range(2)]
            ws.append(jnp.concatenate(taps, axis=0))       # (4*Cin, Cout)
    return jnp.stack(ws, axis=0)


def pallas_conv1x1(x, w, b):
    N, H, W, cin = x.shape
    cout = w.shape[1]
    out = _conv1x1_call(N * H * W, cin, cout)(
        x.reshape(N * H * W, cin), w, b.reshape(1, cout))
    return out.reshape(N, H, W, cout)


def pallas_conv3_bn_relu(inputs, w_pt, b, g, be, res=None):
    N, H, W, _ = inputs[0].shape
    cout = w_pt.shape[0]
    cins = tuple(int(t.shape[-1]) for t in inputs)
    padded = [jnp.pad(t, ((0, 0), (1, 1), (1, 1), (0, 0))) for t in inputs]
    w2 = jnp.transpose(w_pt, (2, 3, 1, 0)).reshape(9 * sum(cins), cout)
    args = padded + [w2, b.reshape(1, cout), g.reshape(1, cout), be.reshape(1, cout)]
    if res is not None:
        args.append(res.reshape(N * H * W, cout))
    out = _conv3_call(N, H, W, cins, cout, res is not None)(*args)
    return out.reshape(N, H, W, cout)


def pallas_deconv_up(x, wd, bd):
    N, H, W, cin = x.shape
    cout = wd.shape[1]
    xp = jnp.pad(x, ((0, 0), (1, 1), (1, 1), (0, 0)))
    wsub = _subpixel_weights(wd)
    planes = _deconv_call(N, H, W, cin, cout)(xp, wsub, bd.reshape(1, cout))
    # interleave the 4 parity planes into (N, 2H, 2W, Cout)
    up = planes.reshape(2, 2, N, H, W, cout)
    up = jnp.transpose(up, (2, 3, 0, 4, 1, 5)).reshape(N, 2 * H, 2 * W, cout)
    return up


def pallas_channel_att(x, w1, w2):
    N, H, W, C = x.shape
    return _channel_att_call(N, H * W, C, w1.shape[1])(x.reshape(N, H * W, C), w1, w2)


def pallas_spatial_conv(cmp_padded, w77):
    N, Hp, Wp, _ = cmp_padded.shape
    H, W = Hp - 6, Wp - 6
    out = _spatial_att_call(N, H, W)(cmp_padded, w77.reshape(1, 49))
    return out.reshape(N, H, W, 1)


class PallasOps:
    conv1x1 = staticmethod(pallas_conv1x1)
    conv3_bn_relu = staticmethod(pallas_conv3_bn_relu)
    deconv_up = staticmethod(pallas_deconv_up)
    channel_att = staticmethod(pallas_channel_att)
    spatial_conv = staticmethod(pallas_spatial_conv)


# ============================================================================
# Pure-XLA reference ops (for correctness checking)
# ============================================================================
class RefOps:
    @staticmethod
    def conv1x1(x, w, b):
        return jnp.einsum('nhwi,io->nhwo', x, w) + b

    @staticmethod
    def conv3_bn_relu(inputs, w_pt, b, g, be, res=None):
        z = inputs[0] if len(inputs) == 1 else jnp.concatenate(inputs, axis=-1)
        rhs = jnp.transpose(w_pt, (2, 3, 1, 0))
        c = lax.conv_general_dilated(z, rhs, (1, 1), [(1, 1), (1, 1)],
                                     dimension_numbers=('NHWC', 'HWIO', 'NHWC'))
        c = c + b
        if res is not None:
            c = c + res
        mean = jnp.mean(c, axis=(0, 1, 2), keepdims=True)
        var = jnp.mean((c - mean) ** 2, axis=(0, 1, 2), keepdims=True)
        out = (c - mean) * lax.rsqrt(var + EPS) * g + be
        return jnp.maximum(out, 0.0)

    @staticmethod
    def deconv_up(x, wd, bd):
        rhs = jnp.transpose(jnp.flip(wd, (2, 3)), (2, 3, 0, 1))
        up = lax.conv_general_dilated(x, rhs, (1, 1), [(2, 2), (2, 2)],
                                      lhs_dilation=(2, 2),
                                      dimension_numbers=('NHWC', 'HWIO', 'NHWC'))
        return up + bd

    @staticmethod
    def channel_att(x, w1, w2):
        m = jnp.max(x, axis=(1, 2))
        h = jnp.maximum(m @ w1, 0.0)
        s = h @ w2
        return 1.0 / (1.0 + jnp.exp(-s))

    @staticmethod
    def spatial_conv(cmp_padded, w77):
        rhs = w77.reshape(7, 7, 1, 1)
        s = lax.conv_general_dilated(cmp_padded, rhs, (1, 1), 'VALID',
                                     dimension_numbers=('NHWC', 'HWIO', 'NHWC'))
        return 1.0 / (1.0 + jnp.exp(-s))


# ============================================================================
# Dense_Unet_k graph (shared between Pallas and reference op implementations)
# ============================================================================
def _down(x):
    """MaxPool2d(2, 2); returns (pooled, original) like Down_sample."""
    N, H, W, C = x.shape
    return x.reshape(N, H // 2, 2, W // 2, 2, C).max(axis=(2, 4)), x


def _densenet(ops, x, dp, num_conv=4):
    outs = [x]
    run_sum = None
    for i in range(num_conv):
        res = run_sum if i > 0 else None
        y = ops.conv3_bn_relu([outs[i]], dp['w'][i], dp['b'][i],
                              dp['g'][i], dp['be'][i], res=res)
        run_sum = outs[i] if run_sum is None else run_sum + outs[i]
        outs.append(y)
    return outs[-1]


def _up_T1(ops, x, up):
    u = ops.deconv_up(x, up['wd'], up['bd'])
    return ops.conv3_bn_relu([u], up['wc'], up['bc'], up['g'], up['be'])


def _up_cat(ops, x, y, up):
    u = ops.deconv_up(x, up['wd'], up['bd'])
    return ops.conv3_bn_relu([u, y], up['wc'], up['bc'], up['g'], up['be'])


def _atten_fuse(ops, t1, t2, ca, sa):
    s = ops.channel_att(t1, ca['w1'], ca['w2'])              # (N, C)
    temp = t1 * s[:, None, None, :]
    cm = jnp.max(temp, axis=-1, keepdims=True)               # channel max
    cmp_ = jnp.pad(cm, ((0, 0), (3, 3), (3, 3), (0, 0)))
    smap = ops.spatial_conv(cmp_, sa['w'])                   # (N, H, W, 1)
    temp = temp * smap
    return t2 * temp + t2


def dense_unet_forward(ops, P, T1_nchw, T2_nchw):
    t1 = jnp.transpose(T1_nchw, (0, 2, 3, 1))
    t2 = jnp.transpose(T2_nchw, (0, 2, 3, 1))

    T1_x1 = ops.conv1x1(t1, P['conv1T1']['w'], P['conv1T1']['b'])
    t2c = jnp.concatenate([t2, t1], axis=-1)                 # torch.cat((T2, T1), 1)
    T2_x1 = ops.conv1x1(t2c, P['conv1T2']['w'], P['conv1T2']['b'])

    T1_x2, T1_y1 = _down(_densenet(ops, T1_x1, P['dT1_1']))
    T2_x2, T2_y1 = _down(_densenet(ops, T2_x1, P['dT2_1']))
    T12_x2 = _atten_fuse(ops, T1_x2, T2_x2, P['ca'][0], P['sa'][0])

    T1_x3, T1_y2 = _down(_densenet(ops, T1_x2, P['dT1_2']))
    T2_x3, T2_y2 = _down(_densenet(ops, T12_x2, P['dT2_2']))
    T12_x3 = _atten_fuse(ops, T1_x3, T2_x3, P['ca'][1], P['sa'][1])

    T1_x4, T1_y3 = _down(_densenet(ops, T1_x3, P['dT1_3']))
    T2_x4, T2_y3 = _down(_densenet(ops, T12_x3, P['dT2_3']))
    T12_x4 = _atten_fuse(ops, T1_x4, T2_x4, P['ca'][2], P['sa'][2])

    T1_x5, T1_y4 = _down(_densenet(ops, T1_x4, P['dT1_4']))
    T2_x5, T2_y4 = _down(_densenet(ops, T12_x4, P['dT2_4']))
    T12_x5 = _atten_fuse(ops, T1_x5, T2_x5, P['ca'][3], P['sa'][3])

    T1_x = _densenet(ops, T1_x5, P['bottom_T1'])
    T2_x = _densenet(ops, T12_x5, P['bottom_T2'])

    T1_1x = _densenet(ops, _up_T1(ops, T1_x, P['up4_T1']), P['u4_T1'])
    T2_1x = _densenet(ops, _up_cat(ops, T2_x, T2_y4, P['up4_T2']), P['u4_T2'])
    T12_x = _atten_fuse(ops, T1_1x, T2_1x, P['ca'][4], P['sa'][4])

    T1_2x = _densenet(ops, _up_T1(ops, T1_1x, P['up3_T1']), P['u3_T1'])
    T2_2x = _densenet(ops, _up_cat(ops, T12_x, T2_y3, P['up3_T2']), P['u3_T2'])
    T12_x = _atten_fuse(ops, T1_2x, T2_2x, P['ca'][5], P['sa'][5])

    T1_3x = _densenet(ops, _up_T1(ops, T1_2x, P['up2_T1']), P['u2_T1'])
    T2_3x = _densenet(ops, _up_cat(ops, T12_x, T2_y2, P['up2_T2']), P['u2_T2'])
    T12_x = _atten_fuse(ops, T1_3x, T2_3x, P['ca'][6], P['sa'][6])

    T1_4x = _densenet(ops, _up_T1(ops, T1_3x, P['up1_T1']), P['u1_T1'])
    T2_4x = _densenet(ops, _up_cat(ops, T12_x, T2_y1, P['up1_T2']), P['u1_T2'])
    T12_x = _atten_fuse(ops, T1_4x, T2_4x, P['ca'][7], P['sa'][7])

    o1 = ops.conv1x1(T1_4x, P['outconvT1']['w'], P['outconvT1']['b'])
    o2 = ops.conv1x1(T12_x, P['outconvT2']['w'], P['outconvT2']['b'])
    return jnp.transpose(o1, (0, 3, 1, 2)), jnp.transpose(o2, (0, 3, 1, 2))


# ============================================================================
# Parameter initialization (matching the PyTorch module's shapes)
# ============================================================================
def init_params(key, f=64, in_chan=1, out_chan=4, num_conv=4):
    keys = iter(jax.random.split(key, 512))

    def nrm(shape, s):
        return s * jax.random.normal(next(keys), shape, jnp.float32)

    def dense_block():
        return {'w': [nrm((f, f, 3, 3), 0.06) for _ in range(num_conv)],
                'b': [nrm((f,), 0.05) for _ in range(num_conv)],
                'g': [1.0 + nrm((f,), 0.05) for _ in range(num_conv)],
                'be': [nrm((f,), 0.05) for _ in range(num_conv)]}

    def up_block(cin_conv):
        return {'wd': nrm((f, f, 4, 4), 0.05), 'bd': nrm((f,), 0.05),
                'wc': nrm((f, cin_conv, 3, 3), 0.05), 'bc': nrm((f,), 0.05),
                'g': 1.0 + nrm((f,), 0.05), 'be': nrm((f,), 0.05)}

    P = {
        'conv1T1': {'w': nrm((in_chan, f), 0.5), 'b': nrm((f,), 0.1)},
        'conv1T2': {'w': nrm((2, f), 0.5), 'b': nrm((f,), 0.1)},
        'outconvT1': {'w': nrm((f, out_chan), 0.1), 'b': nrm((out_chan,), 0.1)},
        'outconvT2': {'w': nrm((f, out_chan), 0.1), 'b': nrm((out_chan,), 0.1)},
    }
    for name in ['dT1_1', 'dT1_2', 'dT1_3', 'dT1_4',
                 'dT2_1', 'dT2_2', 'dT2_3', 'dT2_4',
                 'bottom_T1', 'bottom_T2',
                 'u4_T1', 'u3_T1', 'u2_T1', 'u1_T1',
                 'u4_T2', 'u3_T2', 'u2_T2', 'u1_T2']:
        P[name] = dense_block()
    for name in ['up4_T1', 'up3_T1', 'up2_T1', 'up1_T1']:
        P[name] = up_block(f)            # Upsample_n_Concat_T1: conv(f -> f)
    for name in ['up4_T2', 'up3_T2', 'up2_T2', 'up1_T2']:
        P[name] = up_block(2 * f)        # Upsample_n_Concat_1..4: conv(128 -> f)
    P['ca'] = [{'w1': nrm((f, f // 16), 0.15), 'w2': nrm((f // 16, f), 0.15)}
               for _ in range(8)]
    P['sa'] = [{'w': nrm((7, 7), 0.15)} for _ in range(8)]
    return P


# ============================================================================
if __name__ == "__main__":
    filters, in_chan, out_chan = 64, 1, 4     # module hardcodes 64/128 channels
    N, H, W = 2, 16, 16

    key = jax.random.PRNGKey(0)
    kp, k1, k2 = jax.random.split(key, 3)
    params = init_params(kp, f=filters, in_chan=in_chan, out_chan=out_chan)
    T1 = jax.random.normal(k1, (N, in_chan, H, W), jnp.float32)
    T2 = jax.random.normal(k2, (N, 1, H, W), jnp.float32)

    # Pallas-backed forward
    o1, o2 = dense_unet_forward(PallasOps, params, T1, T2)
    o1, o2 = jax.block_until_ready((o1, o2))

    # Pure-XLA reference forward (same graph, reference op implementations)
    ref_fn = jax.jit(lambda p, a, b: dense_unet_forward(RefOps, p, a, b))
    r1, r2 = jax.block_until_ready(ref_fn(params, T1, T2))

    assert o1.shape == (N, out_chan, H, W), o1.shape
    assert o2.shape == (N, out_chan, H, W), o2.shape
    err1 = float(jnp.max(jnp.abs(o1 - r1)))
    err2 = float(jnp.max(jnp.abs(o2 - r2)))
    assert err1 < 5e-2 and err2 < 5e-2, (err1, err2)
    print("KERNEL_OK")
</pallas_src>

<mosaic_0001>
module attributes {stable_mosaic.version = 11 : i64} {
  func.func @_conv1x1_kernel(%arg0: memref<512x1xf32, #tpu.memory_space<vmem>>, %arg1: memref<1x64xf32, #tpu.memory_space<vmem>>, %arg2: memref<1x64xf32, #tpu.memory_space<vmem>>, %arg3: memref<512x64xf32, #tpu.memory_space<vmem>>) attributes {dimension_semantics = [], scalar_prefetch = 0 : i64, scratch_operands = 0 : i64, tpu.core_type = #tpu.core_type<tc>} {
    %c0 = arith.constant 0 : index
    %c0_0 = arith.constant 0 : index
    %0 = vector.load %arg0[%c0, %c0_0] : memref<512x1xf32, #tpu.memory_space<vmem>>, vector<512x1xf32>
    %c0_1 = arith.constant 0 : index
    %c0_2 = arith.constant 0 : index
    %1 = vector.load %arg1[%c0_1, %c0_2] : memref<1x64xf32, #tpu.memory_space<vmem>>, vector<1x64xf32>
    %cst = arith.constant 0.000000e+00 : f32
    %2 = vector.broadcast %cst : f32 to vector<512x64xf32>
    %3 = vector.broadcast %0 : vector<512x1xf32> to vector<512x64xf32>
    %4 = vector.broadcast %1 : vector<1x64xf32> to vector<512x64xf32>
    %5 = arith.mulf %3, %4 : vector<512x64xf32>
    %6 = arith.addf %2, %5 : vector<512x64xf32>
    %c0_3 = arith.constant 0 : index
    %c0_4 = arith.constant 0 : index
    %7 = vector.load %arg2[%c0_3, %c0_4] : memref<1x64xf32, #tpu.memory_space<vmem>>, vector<1x64xf32>
    %8 = vector.broadcast %7 : vector<1x64xf32> to vector<512x64xf32>
    %9 = arith.addf %6, %8 : vector<512x64xf32>
    %c0_5 = arith.constant 0 : index
    %c0_6 = arith.constant 0 : index
    %10 = vector.load %arg3[%c0_5, %c0_6] : memref<512x64xf32, #tpu.memory_space<vmem>>, vector<512x64xf32>
    tpu.vector_store %arg3[%c0_5, %c0_6], %9 {strides = array<i32>} : memref<512x64xf32, #tpu.memory_space<vmem>>, vector<512x64xf32>,
    return
  }
}

</mosaic_0001>

<llo_original>
// kernel: tpu_custom_call.1
$region0: #{tpu_custom_call.1}
  #allocation0 [shape = 'u32[]', space=smem, size = 0x4, offset = 0x4, fixed_abs, tag = 'smem constant byte address 0x4 - core index']
  #allocation1 [shape = 'u32[144,128]{1,0:T(1,128)}', space=vmem, size = 0x12000, scoped, tag = 'internal scratch']
  %s0 = inlined_call_operand.vmem [shape: f32[512,1], index: 0, kind: input, shape index: {}]
  %s1 = inlined_call_operand.vmem [shape: f32[1,64], index: 1, kind: input, shape index: {}]
  %s2 = inlined_call_operand.vmem [shape: f32[1,64], index: 2, kind: input, shape index: {}]
  %s3 = inlined_call_operand.vmem [shape: f32[512,64], index: 3, kind: output, shape index: {}]
  %s4 = sld [smem:[#allocation0]]
  $region22: #{tpu_custom_call.1} parent=0
    _
  %s6 = ssub.s32 1, %s4
  %s7 = scalar_select 0, %s6, %s4
  // Predicated region
  $region2: #{tpu_custom_call.1} parent=0 // pred_check
    _
  $region3: #{tpu_custom_call.1} parent=0 // pred_check_branch
    %9 = sbr.rel (0) target = $region5
  $region4: #{tpu_custom_call.1} parent=0 // pred_region
    _
  $region5: #{tpu_custom_call.1} parent=0 // pred_fallthru
    _
  // Predicated region
  $region6: #{tpu_custom_call.1} parent=0 // pred_check
    _
  $region7: #{tpu_custom_call.1} parent=0 // pred_check_branch
    %11 = sbr.rel (0) target = $region9
  $region8: #{tpu_custom_call.1} parent=0 // pred_region
    _
  $region9: #{tpu_custom_call.1} parent=0 // pred_fallthru
    _
  // Predicated region
  $region10: #{tpu_custom_call.1} parent=0 // pred_check
    _
  $region11: #{tpu_custom_call.1} parent=0 // pred_check_branch
    %13 = sbr.rel (0) target = $region13
  $region12: #{tpu_custom_call.1} parent=0 // pred_region
    _
  $region13: #{tpu_custom_call.1} parent=0 // pred_fallthru
    _
  %v14 = vld [vmem:[%s0] sm:$0xff]
  %v15 = vld [vmem:[%s0 + $0x8] sm:$0xff]
  %v16 = vld [vmem:[%s0 + $0x10] sm:$0xff]
  %v17 = vld [vmem:[%s0 + $0x18] sm:$0xff]
  %v18 = vld [vmem:[%s0 + $0x20] sm:$0xff]
  %v19 = vld [vmem:[%s0 + $0x28] sm:$0xff]
  %v20 = vld [vmem:[%s0 + $0x30] sm:$0xff]
  %v21 = vld [vmem:[%s0 + $0x38] sm:$0xff]
  %v22 = vld [vmem:[%s0 + $0x40] sm:$0xff]
  %v23 = vld [vmem:[%s0 + $0x48] sm:$0xff]
  %v24 = vld [vmem:[%s0 + $0x50] sm:$0xff]
  %v25 = vld [vmem:[%s0 + $0x58] sm:$0xff]
  %v26 = vld [vmem:[%s0 + $0x60] sm:$0xff]
  %v27 = vld [vmem:[%s0 + $0x68] sm:$0xff]
  %v28 = vld [vmem:[%s0 + $0x70] sm:$0xff]
  %v29 = vld [vmem:[%s0 + $0x78] sm:$0xff]
  %v30 = vld [vmem:[%s0 + $0x80] sm:$0xff]
  %v31 = vld [vmem:[%s0 + $0x88] sm:$0xff]
  %v32 = vld [vmem:[%s0 + $0x90] sm:$0xff]
  %v33 = vld [vmem:[%s0 + $0x98] sm:$0xff]
  %v34 = vld [vmem:[%s0 + $0xa0] sm:$0xff]
  %v35 = vld [vmem:[%s0 + $0xa8] sm:$0xff]
  %v36 = vld [vmem:[%s0 + $0xb0] sm:$0xff]
  %v37 = vld [vmem:[%s0 + $0xb8] sm:$0xff]
  %v38 = vld [vmem:[%s0 + $0xc0] sm:$0xff]
  %v39 = vld [vmem:[%s0 + $0xc8] sm:$0xff]
  %v40 = vld [vmem:[%s0 + $0xd0] sm:$0xff]
  %v41 = vld [vmem:[%s0 + $0xd8] sm:$0xff]
  %v42 = vld [vmem:[%s0 + $0xe0] sm:$0xff]
  %v43 = vld [vmem:[%s0 + $0xe8] sm:$0xff]
  %v44 = vld [vmem:[%s0 + $0xf0] sm:$0xff]
  %v45 = vld [vmem:[%s0 + $0xf8] sm:$0xff]
  %v46 = vld [vmem:[%s0 + $0x100] sm:$0xff]
  %v47 = vld [vmem:[%s0 + $0x108] sm:$0xff]
  %v48 = vld [vmem:[%s0 + $0x110] sm:$0xff]
  %v49 = vld [vmem:[%s0 + $0x118] sm:$0xff]
  %v50 = vld [vmem:[%s0 + $0x120] sm:$0xff]
  %v51 = vld [vmem:[%s0 + $0x128] sm:$0xff]
  %v52 = vld [vmem:[%s0 + $0x130] sm:$0xff]
  %v53 = vld [vmem:[%s0 + $0x138] sm:$0xff]
  %v54 = vld [vmem:[%s0 + $0x140] sm:$0xff]
  %v55 = vld [vmem:[%s0 + $0x148] sm:$0xff]
  %v56 = vld [vmem:[%s0 + $0x150] sm:$0xff]
  %v57 = vld [vmem:[%s0 + $0x158] sm:$0xff]
  %v58 = vld [vmem:[%s0 + $0x160] sm:$0xff]
  %v59 = vld [vmem:[%s0 + $0x168] sm:$0xff]
  %v60 = vld [vmem:[%s0 + $0x170] sm:$0xff]
  %v61 = vld [vmem:[%s0 + $0x178] sm:$0xff]
  %v62 = vld [vmem:[%s0 + $0x180] sm:$0xff]
  %v63 = vld [vmem:[%s0 + $0x188] sm:$0xff]
  %v64 = vld [vmem:[%s0 + $0x190] sm:$0xff]
  %v65 = vld [vmem:[%s0 + $0x198] sm:$0xff]
  %v66 = vld [vmem:[%s0 + $0x1a0] sm:$0xff]
  %v67 = vld [vmem:[%s0 + $0x1a8] sm:$0xff]
  %v68 = vld [vmem:[%s0 + $0x1b0] sm:$0xff]
  %v69 = vld [vmem:[%s0 + $0x1b8] sm:$0xff]
  %v70 = vld [vmem:[%s0 + $0x1c0] sm:$0xff]
  %v71 = vld [vmem:[%s0 + $0x1c8] sm:$0xff]
  %v72 = vld [vmem:[%s0 + $0x1d0] sm:$0xff]
  %v73 = vld [vmem:[%s0 + $0x1d8] sm:$0xff]
  %v74 = vld [vmem:[%s0 + $0x1e0] sm:$0xff]
  %v75 = vld [vmem:[%s0 + $0x1e8] sm:$0xff]
  %v76 = vld [vmem:[%s0 + $0x1f0] sm:$0xff]
  %v77 = vld [vmem:[%s0 + $0x1f8] sm:$0xff]
  %v78 = vld [vmem:[%s1] sm:$0x1]
  %80 = vset.pattern.permute.xlu0 0
  %81 = vperm.xlu0 %80, %v14
  %v82 = vpop.permute.xlu0 %81
  %85 = vset.pattern.permute.xlu0 0
  %86 = vperm.xlu0 %85, %v15
  %v87 = vpop.permute.xlu0 %86
  %90 = vset.pattern.permute.xlu0 0
  %91 = vperm.xlu0 %90, %v16
  %v92 = vpop.permute.xlu0 %91
  %95 = vset.pattern.permute.xlu0 0
  %96 = vperm.xlu0 %95, %v17
  %v97 = vpop.permute.xlu0 %96
  %100 = vset.pattern.permute.xlu0 0
  %101 = vperm.xlu0 %100, %v18
  %v102 = vpop.permute.xlu0 %101
  %105 = vset.pattern.permute.xlu0 0
  %106 = vperm.xlu0 %105, %v19
  %v107 = vpop.permute.xlu0 %106
  %110 = vset.pattern.permute.xlu0 0
  %111 = vperm.xlu0 %110, %v20
  %v112 = vpop.permute.xlu0 %111
  %115 = vset.pattern.permute.xlu0 0
  %116 = vperm.xlu0 %115, %v21
  %v117 = vpop.permute.xlu0 %116
  %120 = vset.pattern.permute.xlu0 0
  %121 = vperm.xlu0 %120, %v22
  %v122 = vpop.permute.xlu0 %121
  %125 = vset.pattern.permute.xlu0 0
  %126 = vperm.xlu0 %125, %v23
  %v127 = vpop.permute.xlu0 %126
  %130 = vset.pattern.permute.xlu0 0
  %131 = vperm.xlu0 %130, %v24
  %v132 = vpop.permute.xlu0 %131
  %135 = vset.pattern.permute.xlu0 0
  %136 = vperm.xlu0 %135, %v25
  %v137 = vpop.permute.xlu0 %136
  %140 = vset.pattern.permute.xlu0 0
  %141 = vperm.xlu0 %140, %v26
  %v142 = vpop.permute.xlu0 %141
  %145 = vset.pattern.permute.xlu0 0
  %146 = vperm.xlu0 %145, %v27
  %v147 = vpop.permute.xlu0 %146
  %150 = vset.pattern.permute.xlu0 0
  %151 = vperm.xlu0 %150, %v28
  %v152 = vpop.permute.xlu0 %151
  %155 = vset.pattern.permute.xlu0 0
  %156 = vperm.xlu0 %155, %v29
  %v157 = vpop.permute.xlu0 %156
  %160 = vset.pattern.permute.xlu0 0
  %161 = vperm.xlu0 %160, %v30
  %v162 = vpop.permute.xlu0 %161
  %165 = vset.pattern.permute.xlu0 0
  %166 = vperm.xlu0 %165, %v31
  %v167 = vpop.permute.xlu0 %166
  %170 = vset.pattern.permute.xlu0 0
  %171 = vperm.xlu0 %170, %v32
  %v172 = vpop.permute.xlu0 %171
  %175 = vset.pattern.permute.xlu0 0
  %176 = vperm.xlu0 %175, %v33
  %v177 = vpop.permute.xlu0 %176
  %180 = vset.pattern.permute.xlu0 0
  %181 = vperm.xlu0 %180, %v34
  %v182 = vpop.permute.xlu0 %181
  %185 = vset.pattern.permute.xlu0 0
  %186 = vperm.xlu0 %185, %v35
  %v187 = vpop.permute.xlu0 %186
  %190 = vset.pattern.permute.xlu0 0
  %191 = vperm.xlu0 %190, %v36
  %v192 = vpop.permute.xlu0 %191
  %195 = vset.pattern.permute.xlu0 0
  %196 = vperm.xlu0 %195, %v37
  %v197 = vpop.permute.xlu0 %196
  %200 = vset.pattern.permute.xlu0 0
  %201 = vperm.xlu0 %200, %v38
  %v202 = vpop.permute.xlu0 %201
  %205 = vset.pattern.permute.xlu0 0
  %206 = vperm.xlu0 %205, %v39
  %v207 = vpop.permute.xlu0 %206
  %210 = vset.pattern.permute.xlu0 0
  %211 = vperm.xlu0 %210, %v40
  %v212 = vpop.permute.xlu0 %211
  %215 = vset.pattern.permute.xlu0 0
  %216 = vperm.xlu0 %215, %v41
  %v217 = vpop.permute.xlu0 %216
  %220 = vset.pattern.permute.xlu0 0
  %221 = vperm.xlu0 %220, %v42
  %v222 = vpop.permute.xlu0 %221
  %225 = vset.pattern.permute.xlu0 0
  %226 = vperm.xlu0 %225, %v43
  %v227 = vpop.permute.xlu0 %226
  %230 = vset.pattern.permute.xlu0 0
  %231 = vperm.xlu0 %230, %v44
  %v232 = vpop.permute.xlu0 %231
  %235 = vset.pattern.permute.xlu0 0
  %236 = vperm.xlu0 %235, %v45
  %v237 = vpop.permute.xlu0 %236
  %240 = vset.pattern.permute.xlu0 0
  %241 = vperm.xlu0 %240, %v46
  %v242 = vpop.permute.xlu0 %241
  %245 = vset.pattern.permute.xlu0 0
  %246 = vperm.xlu0 %245, %v47
  %v247 = vpop.permute.xlu0 %246
  %250 = vset.pattern.permute.xlu0 0
  %251 = vperm.xlu0 %250, %v48
  %v252 = vpop.permute.xlu0 %251
  %255 = vset.pattern.permute.xlu0 0
  %256 = vperm.xlu0 %255, %v49
  %v257 = vpop.permute.xlu0 %256
  %260 = vset.pattern.permute.xlu0 0
  %261 = vperm.xlu0 %260, %v50
  %v262 = vpop.permute.xlu0 %261
  %265 = vset.pattern.permute.xlu0 0
  %266 = vperm.xlu0 %265, %v51
  %v267 = vpop.permute.xlu0 %266
  %270 = vset.pattern.permute.xlu0 0
  %271 = vperm.xlu0 %270, %v52
  %v272 = vpop.permute.xlu0 %271
  %275 = vset.pattern.permute.xlu0 0
  %276 = vperm.xlu0 %275, %v53
  %v277 = vpop.permute.xlu0 %276
  %280 = vset.pattern.permute.xlu0 0
  %281 = vperm.xlu0 %280, %v54
  %v282 = vpop.permute.xlu0 %281
  %285 = vset.pattern.permute.xlu0 0
  %286 = vperm.xlu0 %285, %v55
  %v287 = vpop.permute.xlu0 %286
  %290 = vset.pattern.permute.xlu0 0
  %291 = vperm.xlu0 %290, %v56
  %v292 = vpop.permute.xlu0 %291
  %295 = vset.pattern.permute.xlu0 0
  %296 = vperm.xlu0 %295, %v57
  %v297 = vpop.permute.xlu0 %296
  %300 = vset.pattern.permute.xlu0 0
  %301 = vperm.xlu0 %300, %v58
  %v302 = vpop.permute.xlu0 %301
  %305 = vset.pattern.permute.xlu0 0
  %306 = vperm.xlu0 %305, %v59
  %v307 = vpop.permute.xlu0 %306
  %310 = vset.pattern.permute.xlu0 0
  %311 = vperm.xlu0 %310, %v60
  %v312 = vpop.permute.xlu0 %311
  %315 = vset.pattern.permute.xlu0 0
  %316 = vperm.xlu0 %315, %v61
  %v317 = vpop.permute.xlu0 %316
  %320 = vset.pattern.permute.xlu0 0
  %321 = vperm.xlu0 %320, %v62
  %v322 = vpop.permute.xlu0 %321
  %325 = vset.pattern.permute.xlu0 0
  %326 = vperm.xlu0 %325, %v63
  %v327 = vpop.permute.xlu0 %326
  %330 = vset.pattern.permute.xlu0 0
  %331 = vperm.xlu0 %330, %v64
  %v332 = vpop.permute.xlu0 %331
  %335 = vset.pattern.permute.xlu0 0
  %336 = vperm.xlu0 %335, %v65
  %v337 = vpop.permute.xlu0 %336
  %340 = vset.pattern.permute.xlu0 0
  %341 = vperm.xlu0 %340, %v66
  %v342 = vpop.permute.xlu0 %341
  %345 = vset.pattern.permute.xlu0 0
  %346 = vperm.xlu0 %345, %v67
  %v347 = vpop.permute.xlu0 %346
  %350 = vset.pattern.permute.xlu0 0
  %351 = vperm.xlu0 %350, %v68
  %v352 = vpop.permute.xlu0 %351
  %355 = vset.pattern.permute.xlu0 0
  %356 = vperm.xlu0 %355, %v69
  %v357 = vpop.permute.xlu0 %356
  %360 = vset.pattern.permute.xlu0 0
  %361 = vperm.xlu0 %360, %v70
  %v362 = vpop.permute.xlu0 %361
  %365 = vset.pattern.permute.xlu0 0
  %366 = vperm.xlu0 %365, %v71
  %v367 = vpop.permute.xlu0 %366
  %370 = vset.pattern.permute.xlu0 0
  %371 = vperm.xlu0 %370, %v72
  %v372 = vpop.permute.xlu0 %371
  %375 = vset.pattern.permute.xlu0 0
  %376 = vperm.xlu0 %375, %v73
  %v377 = vpop.permute.xlu0 %376
  %380 = vset.pattern.permute.xlu0 0
  %381 = vperm.xlu0 %380, %v74
  %v382 = vpop.permute.xlu0 %381
  %385 = vset.pattern.permute.xlu0 0
  %386 = vperm.xlu0 %385, %v75
  %v387 = vpop.permute.xlu0 %386
  %390 = vset.pattern.permute.xlu0 0
  %391 = vperm.xlu0 %390, %v76
  %v392 = vpop.permute.xlu0 %391
  %395 = vset.pattern.permute.xlu0 0
  %396 = vperm.xlu0 %395, %v77
  %v397 = vpop.permute.xlu0 %396
  %v400 = vlaneseq
  %v401 = vshrl.u32 %v400, 7
  %v402 = vsub.s32 0, %v401
  %v403 = vrot.slane %v78, %v402
  %v405 = vmul.f32 %v82, %v403
  %v406 = vmul.f32 %v87, %v403
  %v407 = vmul.f32 %v92, %v403
  %v408 = vmul.f32 %v97, %v403
  %v409 = vmul.f32 %v102, %v403
  %v410 = vmul.f32 %v107, %v403
  %v411 = vmul.f32 %v112, %v403
  %v412 = vmul.f32 %v117, %v403
  %v413 = vmul.f32 %v122, %v403
  %v414 = vmul.f32 %v127, %v403
  %v415 = vmul.f32 %v132, %v403
  %v416 = vmul.f32 %v137, %v403
  %v417 = vmul.f32 %v142, %v403
  %v418 = vmul.f32 %v147, %v403
  %v419 = vmul.f32 %v152, %v403
  %v420 = vmul.f32 %v157, %v403
  %v421 = vmul.f32 %v162, %v403
  %v422 = vmul.f32 %v167, %v403
  %v423 = vmul.f32 %v172, %v403
  %v424 = vmul.f32 %v177, %v403
  %v425 = vmul.f32 %v182, %v403
  %v426 = vmul.f32 %v187, %v403
  %v427 = vmul.f32 %v192, %v403
  %v428 = vmul.f32 %v197, %v403
  %v429 = vmul.f32 %v202, %v403
  %v430 = vmul.f32 %v207, %v403
  %v431 = vmul.f32 %v212, %v403
  %v432 = vmul.f32 %v217, %v403
  %v433 = vmul.f32 %v222, %v403
  %v434 = vmul.f32 %v227, %v403
  %v435 = vmul.f32 %v232, %v403
  %v436 = vmul.f32 %v237, %v403
  %v437 = vmul.f32 %v242, %v403
  %v438 = vmul.f32 %v247, %v403
  %v439 = vmul.f32 %v252, %v403
  %v440 = vmul.f32 %v257, %v403
  %v441 = vmul.f32 %v262, %v403
  %v442 = vmul.f32 %v267, %v403
  %v443 = vmul.f32 %v272, %v403
  %v444 = vmul.f32 %v277, %v403
  %v445 = vmul.f32 %v282, %v403
  %v446 = vmul.f32 %v287, %v403
  %v447 = vmul.f32 %v292, %v403
  %v448 = vmul.f32 %v297, %v403
  %v449 = vmul.f32 %v302, %v403
  %v450 = vmul.f32 %v307, %v403
  %v451 = vmul.f32 %v312, %v403
  %v452 = vmul.f32 %v317, %v403
  %v453 = vmul.f32 %v322, %v403
  %v454 = vmul.f32 %v327, %v403
  %v455 = vmul.f32 %v332, %v403
  %v456 = vmul.f32 %v337, %v403
  %v457 = vmul.f32 %v342, %v403
  %v458 = vmul.f32 %v347, %v403
  %v459 = vmul.f32 %v352, %v403
  %v460 = vmul.f32 %v357, %v403
  %v461 = vmul.f32 %v362, %v403
  %v462 = vmul.f32 %v367, %v403
  %v463 = vmul.f32 %v372, %v403
  %v464 = vmul.f32 %v377, %v403
  %v465 = vmul.f32 %v382, %v403
  %v466 = vmul.f32 %v387, %v403
  %v467 = vmul.f32 %v392, %v403
  %v468 = vmul.f32 %v397, %v403
  %v469 = vadd.f32 %v405, 0.0
  %v470 = vadd.f32 %v406, 0.0
  %v471 = vadd.f32 %v407, 0.0
  %v472 = vadd.f32 %v408, 0.0
  %v473 = vadd.f32 %v409, 0.0
  %v474 = vadd.f32 %v410, 0.0
  %v475 = vadd.f32 %v411, 0.0
  %v476 = vadd.f32 %v412, 0.0
  %v477 = vadd.f32 %v413, 0.0
  %v478 = vadd.f32 %v414, 0.0
  %v479 = vadd.f32 %v415, 0.0
  %v480 = vadd.f32 %v416, 0.0
  %v481 = vadd.f32 %v417, 0.0
  %v482 = vadd.f32 %v418, 0.0
  %v483 = vadd.f32 %v419, 0.0
  %v484 = vadd.f32 %v420, 0.0
  %v485 = vadd.f32 %v421, 0.0
  %v486 = vadd.f32 %v422, 0.0
  %v487 = vadd.f32 %v423, 0.0
  %v488 = vadd.f32 %v424, 0.0
  %v489 = vadd.f32 %v425, 0.0
  %v490 = vadd.f32 %v426, 0.0
  %v491 = vadd.f32 %v427, 0.0
  %v492 = vadd.f32 %v428, 0.0
  %v493 = vadd.f32 %v429, 0.0
  %v494 = vadd.f32 %v430, 0.0
  %v495 = vadd.f32 %v431, 0.0
  %v496 = vadd.f32 %v432, 0.0
  %v497 = vadd.f32 %v433, 0.0
  %v498 = vadd.f32 %v434, 0.0
  %v499 = vadd.f32 %v435, 0.0
  %v500 = vadd.f32 %v436, 0.0
  %v501 = vadd.f32 %v437, 0.0
  %v502 = vadd.f32 %v438, 0.0
  %v503 = vadd.f32 %v439, 0.0
  %v504 = vadd.f32 %v440, 0.0
  %v505 = vadd.f32 %v441, 0.0
  %v506 = vadd.f32 %v442, 0.0
  %v507 = vadd.f32 %v443, 0.0
  %v508 = vadd.f32 %v444, 0.0
  %v509 = vadd.f32 %v445, 0.0
  %v510 = vadd.f32 %v446, 0.0
  %v511 = vadd.f32 %v447, 0.0
  %v512 = vadd.f32 %v448, 0.0
  %v513 = vadd.f32 %v449, 0.0
  %v514 = vadd.f32 %v450, 0.0
  %v515 = vadd.f32 %v451, 0.0
  %v516 = vadd.f32 %v452, 0.0
  %v517 = vadd.f32 %v453, 0.0
  %v518 = vadd.f32 %v454, 0.0
  %v519 = vadd.f32 %v455, 0.0
  %v520 = vadd.f32 %v456, 0.0
  %v521 = vadd.f32 %v457, 0.0
  %v522 = vadd.f32 %v458, 0.0
  %v523 = vadd.f32 %v459, 0.0
  %v524 = vadd.f32 %v460, 0.0
  %v525 = vadd.f32 %v461, 0.0
  %v526 = vadd.f32 %v462, 0.0
  %v527 = vadd.f32 %v463, 0.0
  %v528 = vadd.f32 %v464, 0.0
  %v529 = vadd.f32 %v465, 0.0
  %v530 = vadd.f32 %v466, 0.0
  %v531 = vadd.f32 %v467, 0.0
  %v532 = vadd.f32 %v468, 0.0
  %v533 = vld [vmem:[%s2] sm:$0x1]
  %v535 = vlaneseq
  %v536 = vshrl.u32 %v535, 7
  %v537 = vsub.s32 0, %v536
  %v538 = vrot.slane %v533, %v537
  %v540 = vadd.f32 %v469, %v538
  %v541 = vadd.f32 %v470, %v538
  %v542 = vadd.f32 %v471, %v538
  %v543 = vadd.f32 %v472, %v538
  %v544 = vadd.f32 %v473, %v538
  %v545 = vadd.f32 %v474, %v538
  %v546 = vadd.f32 %v475, %v538
  %v547 = vadd.f32 %v476, %v538
  %v548 = vadd.f32 %v477, %v538
  %v549 = vadd.f32 %v478, %v538
  %v550 = vadd.f32 %v479, %v538
  %v551 = vadd.f32 %v480, %v538
  %v552 = vadd.f32 %v481, %v538
  %v553 = vadd.f32 %v482, %v538
  %v554 = vadd.f32 %v483, %v538
  %v555 = vadd.f32 %v484, %v538
  %v556 = vadd.f32 %v485, %v538
  %v557 = vadd.f32 %v486, %v538
  %v558 = vadd.f32 %v487, %v538
  %v559 = vadd.f32 %v488, %v538
  %v560 = vadd.f32 %v489, %v538
  %v561 = vadd.f32 %v490, %v538
  %v562 = vadd.f32 %v491, %v538
  %v563 = vadd.f32 %v492, %v538
  %v564 = vadd.f32 %v493, %v538
  %v565 = vadd.f32 %v494, %v538
  %v566 = vadd.f32 %v495, %v538
  %v567 = vadd.f32 %v496, %v538
  %v568 = vadd.f32 %v497, %v538
  %v569 = vadd.f32 %v498, %v538
  %v570 = vadd.f32 %v499, %v538
  %v571 = vadd.f32 %v500, %v538
  %v572 = vadd.f32 %v501, %v538
  %v573 = vadd.f32 %v502, %v538
  %v574 = vadd.f32 %v503, %v538
  %v575 = vadd.f32 %v504, %v538
  %v576 = vadd.f32 %v505, %v538
  %v577 = vadd.f32 %v506, %v538
  %v578 = vadd.f32 %v507, %v538
  %v579 = vadd.f32 %v508, %v538
  %v580 = vadd.f32 %v509, %v538
  %v581 = vadd.f32 %v510, %v538
  %v582 = vadd.f32 %v511, %v538
  %v583 = vadd.f32 %v512, %v538
  %v584 = vadd.f32 %v513, %v538
  %v585 = vadd.f32 %v514, %v538
  %v586 = vadd.f32 %v515, %v538
  %v587 = vadd.f32 %v516, %v538
  %v588 = vadd.f32 %v517, %v538
  %v589 = vadd.f32 %v518, %v538
  %v590 = vadd.f32 %v519, %v538
  %v591 = vadd.f32 %v520, %v538
  %v592 = vadd.f32 %v521, %v538
  %v593 = vadd.f32 %v522, %v538
  %v594 = vadd.f32 %v523, %v538
  %v595 = vadd.f32 %v524, %v538
  %v596 = vadd.f32 %v525, %v538
  %v597 = vadd.f32 %v526, %v538
  %v598 = vadd.f32 %v527, %v538
  %v599 = vadd.f32 %v528, %v538
  %v600 = vadd.f32 %v529, %v538
  %v601 = vadd.f32 %v530, %v538
  %v602 = vadd.f32 %v531, %v538
  %v603 = vadd.f32 %v532, %v538
  %vm604 = vcmask 523264
  %605 = vst.msk [vmem:[%s3] sm:$0xff] %vm604, %v540
  %606 = vst.msk [vmem:[%s3 + $0x8] sm:$0xff] %vm604, %v541
  %607 = vst.msk [vmem:[%s3 + $0x10] sm:$0xff] %vm604, %v542
  %608 = vst.msk [vmem:[%s3 + $0x18] sm:$0xff] %vm604, %v543
  %609 = vst.msk [vmem:[%s3 + $0x20] sm:$0xff] %vm604, %v544
  %610 = vst.msk [vmem:[%s3 + $0x28] sm:$0xff] %vm604, %v545
  %611 = vst.msk [vmem:[%s3 + $0x30] sm:$0xff] %vm604, %v546
  %612 = vst.msk [vmem:[%s3 + $0x38] sm:$0xff] %vm604, %v547
  %613 = vst.msk [vmem:[%s3 + $0x40] sm:$0xff] %vm604, %v548
  %614 = vst.msk [vmem:[%s3 + $0x48] sm:$0xff] %vm604, %v549
  %615 = vst.msk [vmem:[%s3 + $0x50] sm:$0xff] %vm604, %v550
  %616 = vst.msk [vmem:[%s3 + $0x58] sm:$0xff] %vm604, %v551
  %617 = vst.msk [vmem:[%s3 + $0x60] sm:$0xff] %vm604, %v552
  %618 = vst.msk [vmem:[%s3 + $0x68] sm:$0xff] %vm604, %v553
  %619 = vst.msk [vmem:[%s3 + $0x70] sm:$0xff] %vm604, %v554
  %620 = vst.msk [vmem:[%s3 + $0x78] sm:$0xff] %vm604, %v555
  %621 = vst.msk [vmem:[%s3 + $0x80] sm:$0xff] %vm604, %v556
  %622 = vst.msk [vmem:[%s3 + $0x88] sm:$0xff] %vm604, %v557
  %623 = vst.msk [vmem:[%s3 + $0x90] sm:$0xff] %vm604, %v558
  %624 = vst.msk [vmem:[%s3 + $0x98] sm:$0xff] %vm604, %v559
  %625 = vst.msk [vmem:[%s3 + $0xa0] sm:$0xff] %vm604, %v560
  %626 = vst.msk [vmem:[%s3 + $0xa8] sm:$0xff] %vm604, %v561
  %627 = vst.msk [vmem:[%s3 + $0xb0] sm:$0xff] %vm604, %v562
  %628 = vst.msk [vmem:[%s3 + $0xb8] sm:$0xff] %vm604, %v563
  %629 = vst.msk [vmem:[%s3 + $0xc0] sm:$0xff] %vm604, %v564
  %630 = vst.msk [vmem:[%s3 + $0xc8] sm:$0xff] %vm604, %v565
  %631 = vst.msk [vmem:[%s3 + $0xd0] sm:$0xff] %vm604, %v566
  %632 = vst.msk [vmem:[%s3 + $0xd8] sm:$0xff] %vm604, %v567
  %633 = vst.msk [vmem:[%s3 + $0xe0] sm:$0xff] %vm604, %v568
  %634 = vst.msk [vmem:[%s3 + $0xe8] sm:$0xff] %vm604, %v569
  %635 = vst.msk [vmem:[%s3 + $0xf0] sm:$0xff] %vm604, %v570
  %636 = vst.msk [vmem:[%s3 + $0xf8] sm:$0xff] %vm604, %v571
  %637 = vst.msk [vmem:[%s3 + $0x100] sm:$0xff] %vm604, %v572
  %638 = vst.msk [vmem:[%s3 + $0x108] sm:$0xff] %vm604, %v573
  %639 = vst.msk [vmem:[%s3 + $0x110] sm:$0xff] %vm604, %v574
  %640 = vst.msk [vmem:[%s3 + $0x118] sm:$0xff] %vm604, %v575
  %641 = vst.msk [vmem:[%s3 + $0x120] sm:$0xff] %vm604, %v576
  %642 = vst.msk [vmem:[%s3 + $0x128] sm:$0xff] %vm604, %v577
  %643 = vst.msk [vmem:[%s3 + $0x130] sm:$0xff] %vm604, %v578
  %644 = vst.msk [vmem:[%s3 + $0x138] sm:$0xff] %vm604, %v579
  %645 = vst.msk [vmem:[%s3 + $0x140] sm:$0xff] %vm604, %v580
  %646 = vst.msk [vmem:[%s3 + $0x148] sm:$0xff] %vm604, %v581
  %647 = vst.msk [vmem:[%s3 + $0x150] sm:$0xff] %vm604, %v582
  %648 = vst.msk [vmem:[%s3 + $0x158] sm:$0xff] %vm604, %v583
  %649 = vst.msk [vmem:[%s3 + $0x160] sm:$0xff] %vm604, %v584
  %650 = vst.msk [vmem:[%s3 + $0x168] sm:$0xff] %vm604, %v585
  %651 = vst.msk [vmem:[%s3 + $0x170] sm:$0xff] %vm604, %v586
  %652 = vst.msk [vmem:[%s3 + $0x178] sm:$0xff] %vm604, %v587
  %653 = vst.msk [vmem:[%s3 + $0x180] sm:$0xff] %vm604, %v588
  %654 = vst.msk [vmem:[%s3 + $0x188] sm:$0xff] %vm604, %v589
  %655 = vst.msk [vmem:[%s3 + $0x190] sm:$0xff] %vm604, %v590
  %656 = vst.msk [vmem:[%s3 + $0x198] sm:$0xff] %vm604, %v591
  %657 = vst.msk [vmem:[%s3 + $0x1a0] sm:$0xff] %vm604, %v592
  %658 = vst.msk [vmem:[%s3 + $0x1a8] sm:$0xff] %vm604, %v593
  %659 = vst.msk [vmem:[%s3 + $0x1b0] sm:$0xff] %vm604, %v594
  %660 = vst.msk [vmem:[%s3 + $0x1b8] sm:$0xff] %vm604, %v595
  %661 = vst.msk [vmem:[%s3 + $0x1c0] sm:$0xff] %vm604, %v596
  %662 = vst.msk [vmem:[%s3 + $0x1c8] sm:$0xff] %vm604, %v597
  %663 = vst.msk [vmem:[%s3 + $0x1d0] sm:$0xff] %vm604, %v598
  %664 = vst.msk [vmem:[%s3 + $0x1d8] sm:$0xff] %vm604, %v599
  %665 = vst.msk [vmem:[%s3 + $0x1e0] sm:$0xff] %vm604, %v600
  %666 = vst.msk [vmem:[%s3 + $0x1e8] sm:$0xff] %vm604, %v601
  %667 = vst.msk [vmem:[%s3 + $0x1f0] sm:$0xff] %vm604, %v602
  %668 = vst.msk [vmem:[%s3 + $0x1f8] sm:$0xff] %vm604, %v603
  // Predicated region
  $region14: #{tpu_custom_call.1} parent=0 // pred_check
    _
  $region15: #{tpu_custom_call.1} parent=0 // pred_check_branch
    %670 = sbr.rel (0) target = $region17
  $region16: #{tpu_custom_call.1} parent=0 // pred_region
    _
  $region17: #{tpu_custom_call.1} parent=0 // pred_fallthru
    _
  // Predicated region
  $region18: #{tpu_custom_call.1} parent=0 // pred_check
    _
  $region19: #{tpu_custom_call.1} parent=0 // pred_check_branch
    %672 = sbr.rel (0) target = $region21
  $region20: #{tpu_custom_call.1} parent=0 // pred_region
    _
  $region21: #{tpu_custom_call.1} parent=0 // pred_fallthru
    _

</llo_original>
